<compile_context>
chip_gen: v7x
topology: tpu7x:2x2x1
jax: 0.10.0
libtpu: 0.0.40
codegen_flags: <defaults>
</compile_context>

<pallas_src>
import functools

import jax
import jax.numpy as jnp
from jax.experimental import pallas as pl
from jax.experimental.pallas import tpu as pltpu


def _round_up(v, m):
    return (v + m - 1) // m * m


def _hloss_kernel(x_ref, o_ref, *, hw_tile, hw_total, need_mask):
    # x_ref: (1, C, hw_tile) block.  Softmax axis C sits on sublanes, the
    # hw_tile spatial columns sit on lanes (lane-dense).
    x = x_ref[...].astype(jnp.float32)                      # (1, C, T)

    m = jnp.max(x, axis=1, keepdims=True)                   # (1, 1, T)
    s = x - m
    e = jnp.exp(s)                                          # only transcendental
    z = jnp.sum(e, axis=1, keepdims=True)                   # (1, 1, T)
    es = jnp.sum(e * s, axis=1, keepdims=True)              # (1, 1, T)
    # Per-column entropy:  H = log(Z) - sum(e*s)/Z.
    # approx=True reciprocal would be marginally cheaper on the EUP, but its
    # ~2^-12 relative error risks the 1e-5 parity check, so keep it exact.
    h = jnp.log(z) - es * pl.reciprocal(z, approx=False)    # (1, 1, T)

    if need_mask:
        # Zero the contribution of columns past the true H*W extent.
        col = (jax.lax.broadcasted_iota(jnp.int32, h.shape, 2)
               + pl.program_id(1) * hw_tile)
        h = jnp.where(col < hw_total, h, 0.0)

    # Fold the T lanes down to 128 partial-sum lanes with vreg-aligned static
    # slices: pure VPU adds, no cross-lane XLU reduce and no masked scalar
    # store in the hot loop.
    acc = h[:, :, 0:128]
    for k in range(1, hw_tile // 128):
        acc = acc + h[:, :, k * 128:(k + 1) * 128]
    o_ref[...] = acc.reshape(1, 1, 1, 128)


def hloss(x, *, max_block_bytes=1 << 20, max_lane_tile=32768):
    """Entropy loss matching torch HLoss.forward (softmax over dim=1)."""
    x = jnp.asarray(x)
    if x.ndim < 2:
        raise ValueError("HLoss expects input with at least 2 dims")
    B, C = int(x.shape[0]), int(x.shape[1])

    # Free reshape (no data movement): channel axis stays in place, all
    # trailing spatial axes collapse onto the lane dimension.
    x3 = x.reshape(B, C, -1)
    HW = int(x3.shape[-1])

    # Lane tile: multiple of 128, big enough to amortize the ~0.35 us grid
    # step cost, capped so a double-buffered f32 block stays small on every
    # TPU generation (and the unrolled lane fold stays short).
    bytes_per_lane = C * 4  # f32 compute
    cap = max(128, min(max_lane_tile,
                       (max_block_bytes // bytes_per_lane) // 128 * 128))
    hw_tile = min(_round_up(HW, 128), cap)
    hw_pad = _round_up(HW, hw_tile)
    num_j = hw_pad // hw_tile
    if hw_pad != HW:
        x3 = jnp.pad(x3, ((0, 0), (0, 0), (0, hw_pad - HW)))

    kernel = functools.partial(
        _hloss_kernel, hw_tile=hw_tile, hw_total=HW, need_mask=(hw_pad != HW))

    partials = pl.pallas_call(
        kernel,
        out_shape=jax.ShapeDtypeStruct((B, num_j, 1, 128), jnp.float32),
        grid_spec=pltpu.PrefetchScalarGridSpec(
            num_scalar_prefetch=0,
            grid=(B, num_j),
            in_specs=[pl.BlockSpec((1, C, hw_tile), lambda b, j: (b, 0, j))],
            out_specs=pl.BlockSpec((1, 1, 1, 128), lambda b, j: (b, j, 0, 0)),
        ),
        compiler_params=pltpu.CompilerParams(
            # Every grid step owns its own output block -> fully parallel
            # grid (usable by both TensorCores on v7x), no accumulation race.
            dimension_semantics=("parallel", "parallel"),
        ),
    )(x3)

    # Tiny final reduction (B * num_j * 128 floats) outside the kernel.
    return jnp.sum(partials)


def _hloss_ref(x):
    logp = jax.nn.log_softmax(x, axis=1)
    p = jax.nn.softmax(x, axis=1)
    return -jnp.sum(p * logp)


if __name__ == "__main__":
    key = jax.random.PRNGKey(0)
    # NCHW input, softmax over channel dim (dim=1).
    x = jax.random.normal(key, (2, 4, 16, 16), dtype=jnp.float32)

    out = hloss(x)
    out = jax.block_until_ready(out)

    ref = _hloss_ref(x)
    assert jnp.allclose(out, ref, rtol=1e-5, atol=1e-5), (out, ref)
    print("KERNEL_OK")
</pallas_src>

<mosaic_0001>
module attributes {stable_mosaic.version = 11 : i64} {
  func.func @_hloss_kernel(%arg0: i32, %arg1: i32, %arg2: memref<1x4x256xf32, #tpu.memory_space<vmem>>, %arg3: memref<1x1x1x128xf32, #tpu.memory_space<vmem>>) attributes {dimension_semantics = [#tpu.dimension_semantics<parallel>, #tpu.dimension_semantics<parallel>], iteration_bounds = array<i64: 2, 1>, scalar_prefetch = 0 : i64, scratch_operands = 0 : i64, tpu.core_type = #tpu.core_type<tc>, window_params = [{transform_indices = @transform_0, window_bounds = array<i64: 1, 4, 256>}, {transform_indices = @transform_1, window_bounds = array<i64: 1, 1, 1, 128>}]} {
    %c0 = arith.constant 0 : index
    %c0_0 = arith.constant 0 : index
    %c0_1 = arith.constant 0 : index
    %0 = vector.load %arg2[%c0, %c0_0, %c0_1] : memref<1x4x256xf32, #tpu.memory_space<vmem>>, vector<1x4x256xf32>
    %cst = arith.constant dense<0xFF800000> : vector<1x256xf32>
    %1 = vector.multi_reduction <maximumf>, %0, %cst [1] : vector<1x4x256xf32> to vector<1x256xf32>
    %2 = vector.shape_cast %1 : vector<1x256xf32> to vector<1x1x256xf32>
    %3 = vector.broadcast %2 : vector<1x1x256xf32> to vector<1x4x256xf32>
    %4 = arith.subf %0, %3 : vector<1x4x256xf32>
    %5 = math.exp %4 : vector<1x4x256xf32>
    %cst_2 = arith.constant dense<0.000000e+00> : vector<1x256xf32>
    %6 = vector.multi_reduction <add>, %5, %cst_2 [1] : vector<1x4x256xf32> to vector<1x256xf32>
    %7 = vector.shape_cast %6 : vector<1x256xf32> to vector<1x1x256xf32>
    %8 = arith.mulf %5, %4 : vector<1x4x256xf32>
    %cst_3 = arith.constant dense<0.000000e+00> : vector<1x256xf32>
    %9 = vector.multi_reduction <add>, %8, %cst_3 [1] : vector<1x4x256xf32> to vector<1x256xf32>
    %10 = vector.shape_cast %9 : vector<1x256xf32> to vector<1x1x256xf32>
    %11 = math.log %7 : vector<1x1x256xf32>
    %12 = tpu.reciprocal %7 : vector<1x1x256xf32> -> vector<1x1x256xf32>
    %13 = arith.mulf %10, %12 : vector<1x1x256xf32>
    %14 = arith.subf %11, %13 : vector<1x1x256xf32>
    %15 = vector.extract_strided_slice %14 {offsets = [0, 0, 0], sizes = [1, 1, 128], strides = [1, 1, 1]} : vector<1x1x256xf32> to vector<1x1x128xf32>
    %16 = vector.extract_strided_slice %14 {offsets = [0, 0, 128], sizes = [1, 1, 128], strides = [1, 1, 1]} : vector<1x1x256xf32> to vector<1x1x128xf32>
    %17 = arith.addf %15, %16 : vector<1x1x128xf32>
    %18 = vector.shape_cast %17 : vector<1x1x128xf32> to vector<1x1x1x128xf32>
    %c0_4 = arith.constant 0 : index
    %c0_5 = arith.constant 0 : index
    %c0_6 = arith.constant 0 : index
    %c0_7 = arith.constant 0 : index
    %19 = vector.load %arg3[%c0_4, %c0_5, %c0_6, %c0_7] : memref<1x1x1x128xf32, #tpu.memory_space<vmem>>, vector<1x1x1x128xf32>
    tpu.vector_store %arg3[%c0_4, %c0_5, %c0_6, %c0_7], %18 {strides = array<i32>} : memref<1x1x1x128xf32, #tpu.memory_space<vmem>>, vector<1x1x1x128xf32>,
    return
  }
  func.func @transform_0(%arg0: i32, %arg1: i32) -> (i32, i32, i32) {
    %c0_i32 = arith.constant 0 : i32
    %c0_i32_0 = arith.constant 0 : i32
    return %arg0, %c0_i32, %arg1 : i32, i32, i32
  }
  func.func @transform_1(%arg0: i32, %arg1: i32) -> (i32, i32, i32, i32) {
    %c0_i32 = arith.constant 0 : i32
    %c0_i32_0 = arith.constant 0 : i32
    %c0_i32_1 = arith.constant 0 : i32
    return %arg0, %arg1, %c0_i32, %c0_i32_0 : i32, i32, i32, i32
  }
}

</mosaic_0001>

<llo_original>
// kernel: tpu_custom_call.1
$region0: #{tpu_custom_call.1}
  #allocation0 [shape = 'u32[]', space=smem, size = 0x4, offset = 0x4, fixed_abs, tag = 'smem constant byte address 0x4 - core index']
  #allocation1 [shape = 'u32[144,128]{1,0:T(1,128)}', space=vmem, size = 0x12000, scoped, tag = 'internal scratch']
  %s0 = inlined_call_operand.hbm [shape: f32[2,4,256], index: 0, kind: input, shape index: {}]
  %s1 = inlined_call_operand.hbm [shape: f32[2,1,1,128], index: 1, kind: output, shape index: {}]
  %s2 = sld [smem:[#allocation0]]
  $region41: #{tpu_custom_call.1} parent=0
    _
  %s4 = ssub.s32 1, %s2
  %s5 = scalar_select 0, %s4, %s2
  $region1: #{tpu_custom_call.1} parent=0
    #allocation2 [shape = 'u8[8192]{0}', space=vmem, size = 0x2000, scoped, tag = 'input window, operand 0']
    #allocation3 [shape = 's32[2]{0}', space=sflag, size = 0x8, scoped, tag = 'scoped memory for tpu_custom_call.1']
    #allocation4 [shape = 's32[2]{0}', space=sflag, size = 0x8, scoped, tag = 'scoped memory for tpu_custom_call.1']
    #allocation5 [shape = 'u8[1024]{0}', space=vmem, size = 0x400, scoped, tag = 'output window, operand 0']
    %6 = vsyncpa [#allocation3], 0
    %s7 = scalar_lea.sflag [#allocation3], 1
    %8 = vsyncpa %s7, 0
    %9 = vsyncpa [#allocation4], 0
    %s10 = scalar_lea.sflag [#allocation4], 1
    %11 = vsyncpa %s10, 0
    loop: start=0, step=1, limit=4
    $region2: #{tpu_custom_call.1} parent=1 // loop_pre_header
      _
    $region3: #{tpu_custom_call.1} parent=1 // loop_header
      %s13 = sphi 0, %s17
      %p14 = scmp.ge.s32.totalorder %s13, 4
      %s20 = sphi 0, %s32
      %s21 = sphi 0, %s28
      %s22 = sphi 0, %s20
      %s23 = sphi 0, %s21
      %s24 = sphi 0, %s22
      %s25 = sphi 0, %s23
      %s37 = sphi 0, %s39
      %s40 = sphi 0, %s37
      %s41 = sphi 0, %s40
      %s57 = sphi 0, %s41
      %s65 = sphi 0, %s67
      %s68 = sphi 0, %s65
      %s69 = sphi 0, %s68
      %s85 = sphi 0, %s69
    $region4: #{tpu_custom_call.1} parent=1 // loop_header_branch
      %16 = sbr.rel (%p14) target = $region8
    $region5: #{tpu_custom_call.1} parent=1 // loop_body
      %s18 = ssub.s32 %s13, 1
      %s19 = ssub.s32 %s13, 2
      %s26 = sadd.s32 1, %s21
      %p27 = scmp.ge.s32.totalorder %s26, 1
      %s28 = scalar_select %p27, 0, %s26
      %s29 = sadd.s32 1, %s20
      %s30 = scalar_select %p27, %s29, %s20
      %p31 = scmp.ge.s32.totalorder %s30, 2
      %s32 = scalar_select %p31, 0, %s30
      %s33 = ssub.s32 %s20, %s32
      %s34 = ssub.s32 %s21, %s28
      %s35 = sor.u32 %s33, %s34
      %p36 = scmp.eq.s32.totalorder %s35, 0
      %s38 = sadd.s32 %s37, 1
      %s39 = scalar_select %p36, %s37, %s38
      %p42 = pneg %p36
      %p43 = scmp.eq.s32.totalorder %s13, 1
      %p44 = por %p42, %p43
      %p45 = scmp.ne.s32.totalorder %s37, %s40
      %p46 = scmp.eq.s32.totalorder %s13, 0
      %p47 = por %p45, %p46
      %p48 = scmp.ne.s32.totalorder %s37, %s40
      %p49 = scmp.eq.s32.totalorder %s18, 1
      %p50 = por %p48, %p49
      %p51 = scmp.ne.s32.totalorder %s40, %s41
      %p52 = scmp.eq.s32.totalorder %s18, 0
      %p53 = por %p51, %p52
      %p54 = scmp.ne.s32.totalorder %s40, %s41
      %p55 = scmp.eq.s32.totalorder %s19, 1
      %p56 = por %p54, %p55
      %p58 = scmp.ne.s32.totalorder %s41, %s57
      %p59 = scmp.eq.s32.totalorder %s19, 0
      %p60 = por %p58, %p59
      %s61 = ssub.s32 %s20, %s32
      %s62 = ssub.s32 %s21, %s28
      %s63 = sor.u32 %s61, %s62
      %p64 = scmp.eq.s32.totalorder %s63, 0
      %s66 = sadd.s32 %s65, 1
      %s67 = scalar_select %p64, %s65, %s66
      %p70 = pneg %p64
      %p71 = scmp.eq.s32.totalorder %s13, 1
      %p72 = por %p70, %p71
      %p73 = scmp.ne.s32.totalorder %s65, %s68
      %p74 = scmp.eq.s32.totalorder %s13, 0
      %p75 = por %p73, %p74
      %p76 = scmp.ne.s32.totalorder %s65, %s68
      %p77 = scmp.eq.s32.totalorder %s18, 1
      %p78 = por %p76, %p77
      %p79 = scmp.ne.s32.totalorder %s68, %s69
      %p80 = scmp.eq.s32.totalorder %s18, 0
      %p81 = por %p79, %p80
      %p82 = scmp.ne.s32.totalorder %s68, %s69
      %p83 = scmp.eq.s32.totalorder %s19, 1
      %p84 = por %p82, %p83
      %p86 = scmp.ne.s32.totalorder %s69, %s85
      %p87 = scmp.eq.s32.totalorder %s19, 0
      %p88 = por %p86, %p87
      %p89 = scmp.le.s32.totalorder 1, %s13
      %p90 = scmp.lt.s32.totalorder %s13, 3
      %p91 = pnand %p89, %p90
      %p92 = pneg %p91
      // Predicated region
      $region9: #{tpu_custom_call.1} parent=5 // pred_check
        _
      $region10: #{tpu_custom_call.1} parent=5 // pred_check_branch
        %94 = sbr.rel (%p91) target = $region12
      $region11: #{tpu_custom_call.1} parent=5 // pred_region
        %s95 = ssub.s32 %s13, 1
      $region12: #{tpu_custom_call.1} parent=5 // pred_fallthru
        _
      %p96 = scmp.lt.s32.totalorder %s13, 2
      // Predicated region
      $region13: #{tpu_custom_call.1} parent=5 // pred_check
        %p97 = pneg %p96
      $region14: #{tpu_custom_call.1} parent=5 // pred_check_branch
        %99 = sbr.rel (%p97) target = $region16
      $region15: #{tpu_custom_call.1} parent=5 // pred_region
        // Predicated region
        $region17: #{tpu_custom_call.1} parent=15 // pred_check
          %p100 = pneg %p47
        $region18: #{tpu_custom_call.1} parent=15 // pred_check_branch
          %102 = sbr.rel (%p100) target = $region20
        $region19: #{tpu_custom_call.1} parent=15 // pred_region
          %s103 = sand.u32 %s37, 1
          %s104 = scalar_lea.sflag [#allocation3], %s103
          %s105 = sand.u32 %s37, 1
          %s106 = smul.addr %s105, 8
          %s107 = scalar_lea.vmem [#allocation2], %s106
          %s108 = smul.u32 2, %s21
          %s110 = ssub.s32 128, 128
          %111 = vsyncadd %s104, %s110
          %s112 = smul.addr %s20, 2
          %s113 = sadd.s32 %s108, %s112
          %s114 = smul.addr %s113, 64
          %s115 = scalar_lea.hbm %s0, %s114
          %s117 = sshll.u32 %s107, 4
          %s118 = int_to_ptr.vmem [resolvable:$true] %s117
          %120 = dma.hbm_to_vmem [thread:$0]  %s115, 128, %s118, %s104
        $region20: #{tpu_custom_call.1} parent=15 // pred_fallthru
          _
      $region16: #{tpu_custom_call.1} parent=5 // pred_fallthru
        _
      %p121 = scmp.le.s32.totalorder 1, %s13
      %p122 = scmp.lt.s32.totalorder %s13, 3
      %p123 = pnand %p121, %p122
      %p124 = pneg %p123
      // Predicated region
      $region21: #{tpu_custom_call.1} parent=5 // pred_check
        _
      $region22: #{tpu_custom_call.1} parent=5 // pred_check_branch
        %126 = sbr.rel (%p123) target = $region24
      $region23: #{tpu_custom_call.1} parent=5 // pred_region
        %s127 = ssub.s32 %s13, 1
        %s128 = sand.u32 %s40, 1
        %s129 = scalar_lea.sflag [#allocation3], %s128
        %s130 = sand.u32 %s40, 1
        %s131 = smul.addr %s130, 8
        %s132 = scalar_lea.vmem [#allocation2], %s131
        // Predicated region
        $region25: #{tpu_custom_call.1} parent=23 // pred_check
          %p133 = pneg %p53
        $region26: #{tpu_custom_call.1} parent=23 // pred_check_branch
          %135 = sbr.rel (%p133) target = $region28
        $region27: #{tpu_custom_call.1} parent=23 // pred_region
          %136 = dma.done %s129, 128
        $region28: #{tpu_custom_call.1} parent=23 // pred_fallthru
          _
        %s137 = sand.u32 %s40, 1
        %s138 = scalar_lea.sflag [#allocation3], %s137
        %s139 = sand.u32 %s40, 1
        %s140 = smul.addr %s139, 8
        %s141 = scalar_lea.vmem [#allocation2], %s140
        %p142 = pneg %p53
        %p143 = pneg %p50
        %p144 = pneg %p81
        %p145 = pneg %p78
        %s146 = sand.u32 %s68, 1
        %s147 = scalar_lea.sflag [#allocation4], %s146
        %s148 = sand.u32 %s68, 1
        %s149 = scalar_lea.vmem [#allocation5], %s148
        %s150 = smul.u32 2, %s23
        %v151 = vld [vmem:[%s132] sm:$0xff]
        %v153 = vcombine.high %v151, %v151
        %vm155 = vcmask 1043456
        %v156 = vsel %vm155, %v151, -inf
        %v157 = vrot.slane %v156, 4
        %v158 = vmax.f32 %v156, %v157
        %v159 = vrot.slane %v158, 2
        %v160 = vmax.f32 %v158, %v159
        %v161 = vrot.slane %v160, 1
        %v162 = vmax.f32 %v160, %v161
        %v163 = vsel %vm155, %v153, -inf
        %v164 = vrot.slane %v163, 4
        %v165 = vmax.f32 %v163, %v164
        %v166 = vrot.slane %v165, 2
        %v167 = vmax.f32 %v165, %v166
        %v168 = vrot.slane %v167, 1
        %v169 = vmax.f32 %v167, %v168
        %v172 = vcombine.low %v162, %v169
        %v174 = vsub.f32 %v151, %v172
        %v175 = vmul.f32 %v174, 1.442695
        %v176 = vpow.pop %v175
        %v178 = vcombine.high %v176, %v176
        %v180 = vsel %vm155, %v176, 0.0
        %v181 = vrot.slane %v180, 4
        %v182 = vadd.f32 %v180, %v181
        %v183 = vrot.slane %v182, 2
        %v184 = vadd.f32 %v182, %v183
        %v185 = vrot.slane %v184, 1
        %v186 = vadd.f32 %v184, %v185
        %v187 = vsel %vm155, %v178, 0.0
        %v188 = vrot.slane %v187, 4
        %v189 = vadd.f32 %v187, %v188
        %v190 = vrot.slane %v189, 2
        %v191 = vadd.f32 %v189, %v190
        %v192 = vrot.slane %v191, 1
        %v193 = vadd.f32 %v191, %v192
        %v194 = vmul.f32 %v176, %v174
        %v196 = vcombine.high %v194, %v194
        %v198 = vsel %vm155, %v194, 0.0
        %v199 = vrot.slane %v198, 4
        %v200 = vadd.f32 %v198, %v199
        %v201 = vrot.slane %v200, 2
        %v202 = vadd.f32 %v200, %v201
        %v203 = vrot.slane %v202, 1
        %v204 = vadd.f32 %v202, %v203
        %v205 = vsel %vm155, %v196, 0.0
        %v206 = vrot.slane %v205, 4
        %v207 = vadd.f32 %v205, %v206
        %v208 = vrot.slane %v207, 2
        %v209 = vadd.f32 %v207, %v208
        %v210 = vrot.slane %v209, 1
        %v211 = vadd.f32 %v209, %v210
        %v212 = vlog2.pop %v186
        %v213 = vmul.f32 %v212, 0.6931472
        %v214 = vlog2.pop %v193
        %v215 = vmul.f32 %v214, 0.6931472
        %v216 = vrcp.pop %v186
        %v217 = vrcp.pop %v193
        %v218 = vmul.f32 %v204, %v216
        %v219 = vmul.f32 %v211, %v217
        %v220 = vsub.f32 %v213, %v218
        %v221 = vsub.f32 %v215, %v219
        %v222 = vadd.f32 %v220, %v221
        %223 = vst [vmem:[%s149] sm:$0x1] %v222
        %s224 = sand.u32 %s68, 1
        %s225 = scalar_lea.sflag [#allocation4], %s224
        %s226 = sand.u32 %s68, 1
        %s227 = scalar_lea.vmem [#allocation5], %s226
        // Predicated region
        $region29: #{tpu_custom_call.1} parent=23 // pred_check
          %p228 = pneg %p78
        $region30: #{tpu_custom_call.1} parent=23 // pred_check_branch
          %230 = sbr.rel (%p228) target = $region32
        $region31: #{tpu_custom_call.1} parent=23 // pred_region
          %s232 = ssub.s32 16, 16
          %233 = vsyncadd %s225, %s232
          %s234 = sadd.s32 %s23, %s22
          %s235 = smul.addr %s234, 16
          %s236 = scalar_lea.hbm %s1, %s235
          %s238 = sshll.u32 %s227, 4
          %s239 = int_to_ptr.vmem [resolvable:$true] %s238
          %241 = dma.vmem_to_hbm [thread:$0]  %s239, 16, %s236, %s225
        $region32: #{tpu_custom_call.1} parent=23 // pred_fallthru
          _
      $region24: #{tpu_custom_call.1} parent=5 // pred_fallthru
        _
      %p242 = scmp.le.s32.totalorder 2, %s13
      // Predicated region
      $region33: #{tpu_custom_call.1} parent=5 // pred_check
        %p243 = pneg %p242
      $region34: #{tpu_custom_call.1} parent=5 // pred_check_branch
        %245 = sbr.rel (%p243) target = $region36
      $region35: #{tpu_custom_call.1} parent=5 // pred_region
        %s246 = ssub.s32 %s13, 2
        // Predicated region
        $region37: #{tpu_custom_call.1} parent=35 // pred_check
          %p247 = pneg %p84
        $region38: #{tpu_custom_call.1} parent=35 // pred_check_branch
          %249 = sbr.rel (%p247) target = $region40
        $region39: #{tpu_custom_call.1} parent=35 // pred_region
          %s250 = sand.u32 %s69, 1
          %s251 = scalar_lea.sflag [#allocation4], %s250
          %s252 = sand.u32 %s69, 1
          %s253 = scalar_lea.vmem [#allocation5], %s252
          %254 = dma.done %s251, 16
        $region40: #{tpu_custom_call.1} parent=35 // pred_fallthru
          _
      $region36: #{tpu_custom_call.1} parent=5 // pred_fallthru
        _
    $region6: #{tpu_custom_call.1} parent=1 // loop_footer
      %s17 = sadd.s32 1, %s13
    $region7: #{tpu_custom_call.1} parent=1 // loop_footer_branch
      %12 = sbr.rel target = $region3
    $region8: #{tpu_custom_call.1} parent=1 // loop_exit
      _
    %255 = vsyncpa [#allocation3], 1
    %s256 = scalar_lea.sflag [#allocation3], 1
    %257 = vsyncpa %s256, 1
    %258 = vsyncpa [#allocation4], 1
    %s259 = scalar_lea.sflag [#allocation4], 1
    %260 = vsyncpa %s259, 1

</llo_original>
